<compile_context>
chip_gen: v5e
topology: v5e:2x2
jax: 0.10.0
libtpu: 0.0.40
codegen_flags: <defaults>
</compile_context>

<pallas_src>
import jax
import jax.numpy as jnp
from jax.experimental import pallas as pl
from jax.experimental.pallas import tpu as pltpu


def _sft_kernel(x_ref, ws0_ref, bs0_ref, ws1_ref, bs1_ref, wh_ref, bh_ref, o_ref):
    x = x_ref[0].astype(jnp.float32)              # (C, tile_s), lanes = spatial
    C = x.shape[0]

    def mix(w_ref, b_ref, v):
        # 1x1 conv:  out[co, :] = sum_ci w[co, ci] * v[ci, :] + b[co]
        w = w_ref[...].astype(jnp.float32)        # (C_out, C_in)
        b = b_ref[...].astype(jnp.float32)        # (C_out, 1)
        if C >= 32:
            # Channel dim big enough that the MXU is the cheaper unit.
            return jnp.dot(w, v, preferred_element_type=jnp.float32) + b
        # Tiny C: VPU broadcast-FMAs (static unroll, LLO-schedulable).
        acc = w[:, 0:1] * v[0:1, :]
        for ci in range(1, C):
            acc = acc + w[:, ci:ci + 1] * v[ci:ci + 1, :]
        return acc + b

    t = mix(ws0_ref, bs0_ref, x)                       # scale conv0
    scale = jax.nn.sigmoid(mix(ws1_ref, bs1_ref, t))   # scale conv1 -> sigmoid (EUP)
    shift = mix(wh_ref, bh_ref, x)                     # fused shift branch
    o_ref[0] = (x * (scale + 1.0) + shift).astype(o_ref.dtype)


def sft_layer(x_nchw, params, *, tile_s=None):
    """SFTLayer forward on NCHW input.

    params: weights in (C_out, C_in) form (= torch conv.weight[:, :, 0, 0])
            and biases of shape (C,) (= torch conv.bias).
    tile_s: optional spatial tile override; default is auto-sized from a
            conservative VMEM budget.
    """
    N, C, H, W = x_nchw.shape
    S = H * W
    x3 = x_nchw.reshape(N, C, S)                  # pure view, no data movement

    f32 = jnp.float32
    ws0 = params["ws0"].astype(f32)
    bs0 = params["bs0"].reshape(C, 1).astype(f32)
    ws1 = params["ws1"].astype(f32)
    bs1 = params["bs1"].reshape(C, 1).astype(f32)
    # Fold the two shift convs into one affine map (done once, outside kernel).
    wh = (params["wh1"] @ params["wh0"]).astype(f32)
    bh = (params["wh1"] @ params["bh0"].reshape(C, 1)
          + params["bh1"].reshape(C, 1)).astype(f32)

    itemsize = jnp.dtype(x_nchw.dtype).itemsize

    # Lane-dense spatial tiling: multiple of 128 (or the full extent if small).
    # Auto-size the tile from a conservative per-block working-set estimate:
    #   in + out blocks (double-buffered) + ~4 live f32 temporaries per column.
    if S >= 128:
        bytes_per_col = C * (4 * itemsize + 4 * 4)
        budget = 8 * 1024 * 1024                  # well inside 16/32 MiB scoped VMEM
        auto = max(128, (budget // max(1, bytes_per_col) // 128) * 128)
        ts = auto if tile_s is None else max(128, (min(tile_s, auto) // 128) * 128)
        ts = min(ts, (S // 128) * 128 if S % 128 == 0 else ts)
        ts = min(ts, max(128, (S // 128) * 128)) if S >= 128 else S
        ts = max(128, min(ts, (pl.cdiv(S, 128)) * 128))
    else:
        ts = S
    Sp = pl.cdiv(S, ts) * ts
    if Sp != S:
        # Ragged spatial extent -> pad once (only taken when S % ts != 0).
        x3 = jnp.pad(x3, ((0, 0), (0, 0), (0, Sp - S)))

    grid = (N, Sp // ts)
    x_spec = pl.BlockSpec((1, C, ts), lambda n, j: (n, 0, j))
    w_spec = pl.BlockSpec((C, C), lambda n, j: (0, 0))
    b_spec = pl.BlockSpec((C, 1), lambda n, j: (0, 0))

    cost = pl.CostEstimate(
        flops=N * S * (3 * 2 * C * C + 3 * C),    # 3 channel mixes + SFT combine
        transcendentals=N * S * C,                # sigmoid
        bytes_accessed=2 * N * C * S * itemsize + 3 * C * C * 4,
    )

    out3 = pl.pallas_call(
        _sft_kernel,
        out_shape=jax.ShapeDtypeStruct((N, C, Sp), x_nchw.dtype),
        grid_spec=pltpu.PrefetchScalarGridSpec(
            num_scalar_prefetch=0,
            grid=grid,
            in_specs=[
                x_spec,          # x tile (C, tile_s)
                w_spec, b_spec,  # scale conv0
                w_spec, b_spec,  # scale conv1
                w_spec, b_spec,  # fused shift conv
            ],
            out_specs=pl.BlockSpec((1, C, ts), lambda n, j: (n, 0, j)),
        ),
        compiler_params=pltpu.CompilerParams(
            dimension_semantics=("parallel", "parallel")),
        cost_estimate=cost,
    )(x3, ws0, bs0, ws1, bs1, wh, bh)

    if Sp != S:
        out3 = out3[:, :, :S]
    return out3.reshape(N, C, H, W)


def sft_layer_ref(x_nchw, params):
    """Pure-JAX reference of the PyTorch forward (unfused, for verification)."""
    def conv1x1(w, b, v):
        return jnp.einsum('oi,nihw->nohw', w, v) + b[None, :, None, None]
    t = conv1x1(params["ws0"], params["bs0"], x_nchw)
    scale = jax.nn.sigmoid(conv1x1(params["ws1"], params["bs1"], t))
    u = conv1x1(params["wh0"], params["bh0"], x_nchw)
    shift = conv1x1(params["wh1"], params["bh1"], u)
    return x_nchw * (scale + 1.0) + shift


def init_params(key, C):
    # Weights stored as (C_out, C_in); for real torch weights use
    # conv.weight[:, :, 0, 0] and conv.bias directly (no transpose needed).
    ks = jax.random.split(key, 8)
    w = lambda k: jax.random.normal(k, (C, C), jnp.float32) * 0.1
    b = lambda k: jax.random.normal(k, (C,), jnp.float32) * 0.1
    return {
        "ws0": w(ks[0]), "bs0": b(ks[1]),
        "ws1": w(ks[2]), "bs1": b(ks[3]),
        "wh0": w(ks[4]), "bh0": b(ks[5]),
        "wh1": w(ks[6]), "bh1": b(ks[7]),
    }


if __name__ == "__main__":
    key = jax.random.PRNGKey(0)
    k_x, k_p = jax.random.split(key)

    N, C, H, W = 2, 8, 16, 16          # in_channels == out_channels == 8
    x = jax.random.normal(k_x, (N, C, H, W), jnp.float32)
    params = init_params(k_p, C)

    out = jax.block_until_ready(sft_layer(x, params))
    ref = sft_layer_ref(x, params)

    assert out.shape == (N, C, H, W)
    assert jnp.allclose(out, ref, atol=1e-5, rtol=1e-5), "mismatch vs reference"

    print("KERNEL_OK")
</pallas_src>

<mosaic_0001>
module attributes {stable_mosaic.version = 11 : i64} {
  func.func @_sft_kernel(%arg0: i32, %arg1: i32, %arg2: memref<1x8x256xf32, #tpu.memory_space<vmem>>, %arg3: memref<8x8xf32, #tpu.memory_space<vmem>>, %arg4: memref<8x1xf32, #tpu.memory_space<vmem>>, %arg5: memref<8x8xf32, #tpu.memory_space<vmem>>, %arg6: memref<8x1xf32, #tpu.memory_space<vmem>>, %arg7: memref<8x8xf32, #tpu.memory_space<vmem>>, %arg8: memref<8x1xf32, #tpu.memory_space<vmem>>, %arg9: memref<1x8x256xf32, #tpu.memory_space<vmem>>) attributes {dimension_semantics = [#tpu.dimension_semantics<parallel>, #tpu.dimension_semantics<parallel>], iteration_bounds = array<i64: 2, 1>, scalar_prefetch = 0 : i64, scratch_operands = 0 : i64, tpu.core_type = #tpu.core_type<tc>, window_params = [{transform_indices = @transform_0, window_bounds = array<i64: 1, 8, 256>}, {pipeline_mode = #tpu.pipeline_mode<synchronous>, transform_indices = @transform_1, window_bounds = array<i64: 8, 8>}, {pipeline_mode = #tpu.pipeline_mode<synchronous>, transform_indices = @transform_2, window_bounds = array<i64: 8, 1>}, {pipeline_mode = #tpu.pipeline_mode<synchronous>, transform_indices = @transform_3, window_bounds = array<i64: 8, 8>}, {pipeline_mode = #tpu.pipeline_mode<synchronous>, transform_indices = @transform_4, window_bounds = array<i64: 8, 1>}, {pipeline_mode = #tpu.pipeline_mode<synchronous>, transform_indices = @transform_5, window_bounds = array<i64: 8, 8>}, {pipeline_mode = #tpu.pipeline_mode<synchronous>, transform_indices = @transform_6, window_bounds = array<i64: 8, 1>}, {transform_indices = @transform_7, window_bounds = array<i64: 1, 8, 256>}]} {
    %c0 = arith.constant 0 : index
    %c0_0 = arith.constant 0 : index
    %c0_1 = arith.constant 0 : index
    %0 = vector.load %arg2[%c0, %c0_0, %c0_1] : memref<1x8x256xf32, #tpu.memory_space<vmem>>, vector<1x8x256xf32>
    %1 = vector.shape_cast %0 : vector<1x8x256xf32> to vector<8x256xf32>
    %c0_2 = arith.constant 0 : index
    %c0_3 = arith.constant 0 : index
    %2 = vector.load %arg3[%c0_2, %c0_3] : memref<8x8xf32, #tpu.memory_space<vmem>>, vector<8x8xf32>
    %c0_4 = arith.constant 0 : index
    %c0_5 = arith.constant 0 : index
    %3 = vector.load %arg4[%c0_4, %c0_5] : memref<8x1xf32, #tpu.memory_space<vmem>>, vector<8x1xf32>
    %4 = vector.extract_strided_slice %2 {offsets = [0, 0], sizes = [8, 1], strides = [1, 1]} : vector<8x8xf32> to vector<8x1xf32>
    %5 = vector.extract_strided_slice %1 {offsets = [0, 0], sizes = [1, 256], strides = [1, 1]} : vector<8x256xf32> to vector<1x256xf32>
    %6 = vector.broadcast %4 : vector<8x1xf32> to vector<8x256xf32>
    %7 = vector.broadcast %5 : vector<1x256xf32> to vector<8x256xf32>
    %8 = arith.mulf %6, %7 : vector<8x256xf32>
    %9 = vector.extract_strided_slice %2 {offsets = [0, 1], sizes = [8, 1], strides = [1, 1]} : vector<8x8xf32> to vector<8x1xf32>
    %10 = vector.extract_strided_slice %1 {offsets = [1, 0], sizes = [1, 256], strides = [1, 1]} : vector<8x256xf32> to vector<1x256xf32>
    %11 = vector.broadcast %9 : vector<8x1xf32> to vector<8x256xf32>
    %12 = vector.broadcast %10 : vector<1x256xf32> to vector<8x256xf32>
    %13 = arith.mulf %11, %12 : vector<8x256xf32>
    %14 = arith.addf %8, %13 : vector<8x256xf32>
    %15 = vector.extract_strided_slice %2 {offsets = [0, 2], sizes = [8, 1], strides = [1, 1]} : vector<8x8xf32> to vector<8x1xf32>
    %16 = vector.extract_strided_slice %1 {offsets = [2, 0], sizes = [1, 256], strides = [1, 1]} : vector<8x256xf32> to vector<1x256xf32>
    %17 = vector.broadcast %15 : vector<8x1xf32> to vector<8x256xf32>
    %18 = vector.broadcast %16 : vector<1x256xf32> to vector<8x256xf32>
    %19 = arith.mulf %17, %18 : vector<8x256xf32>
    %20 = arith.addf %14, %19 : vector<8x256xf32>
    %21 = vector.extract_strided_slice %2 {offsets = [0, 3], sizes = [8, 1], strides = [1, 1]} : vector<8x8xf32> to vector<8x1xf32>
    %22 = vector.extract_strided_slice %1 {offsets = [3, 0], sizes = [1, 256], strides = [1, 1]} : vector<8x256xf32> to vector<1x256xf32>
    %23 = vector.broadcast %21 : vector<8x1xf32> to vector<8x256xf32>
    %24 = vector.broadcast %22 : vector<1x256xf32> to vector<8x256xf32>
    %25 = arith.mulf %23, %24 : vector<8x256xf32>
    %26 = arith.addf %20, %25 : vector<8x256xf32>
    %27 = vector.extract_strided_slice %2 {offsets = [0, 4], sizes = [8, 1], strides = [1, 1]} : vector<8x8xf32> to vector<8x1xf32>
    %28 = vector.extract_strided_slice %1 {offsets = [4, 0], sizes = [1, 256], strides = [1, 1]} : vector<8x256xf32> to vector<1x256xf32>
    %29 = vector.broadcast %27 : vector<8x1xf32> to vector<8x256xf32>
    %30 = vector.broadcast %28 : vector<1x256xf32> to vector<8x256xf32>
    %31 = arith.mulf %29, %30 : vector<8x256xf32>
    %32 = arith.addf %26, %31 : vector<8x256xf32>
    %33 = vector.extract_strided_slice %2 {offsets = [0, 5], sizes = [8, 1], strides = [1, 1]} : vector<8x8xf32> to vector<8x1xf32>
    %34 = vector.extract_strided_slice %1 {offsets = [5, 0], sizes = [1, 256], strides = [1, 1]} : vector<8x256xf32> to vector<1x256xf32>
    %35 = vector.broadcast %33 : vector<8x1xf32> to vector<8x256xf32>
    %36 = vector.broadcast %34 : vector<1x256xf32> to vector<8x256xf32>
    %37 = arith.mulf %35, %36 : vector<8x256xf32>
    %38 = arith.addf %32, %37 : vector<8x256xf32>
    %39 = vector.extract_strided_slice %2 {offsets = [0, 6], sizes = [8, 1], strides = [1, 1]} : vector<8x8xf32> to vector<8x1xf32>
    %40 = vector.extract_strided_slice %1 {offsets = [6, 0], sizes = [1, 256], strides = [1, 1]} : vector<8x256xf32> to vector<1x256xf32>
    %41 = vector.broadcast %39 : vector<8x1xf32> to vector<8x256xf32>
    %42 = vector.broadcast %40 : vector<1x256xf32> to vector<8x256xf32>
    %43 = arith.mulf %41, %42 : vector<8x256xf32>
    %44 = arith.addf %38, %43 : vector<8x256xf32>
    %45 = vector.extract_strided_slice %2 {offsets = [0, 7], sizes = [8, 1], strides = [1, 1]} : vector<8x8xf32> to vector<8x1xf32>
    %46 = vector.extract_strided_slice %1 {offsets = [7, 0], sizes = [1, 256], strides = [1, 1]} : vector<8x256xf32> to vector<1x256xf32>
    %47 = vector.broadcast %45 : vector<8x1xf32> to vector<8x256xf32>
    %48 = vector.broadcast %46 : vector<1x256xf32> to vector<8x256xf32>
    %49 = arith.mulf %47, %48 : vector<8x256xf32>
    %50 = arith.addf %44, %49 : vector<8x256xf32>
    %51 = vector.broadcast %3 : vector<8x1xf32> to vector<8x256xf32>
    %52 = arith.addf %50, %51 : vector<8x256xf32>
    %c0_6 = arith.constant 0 : index
    %c0_7 = arith.constant 0 : index
    %53 = vector.load %arg5[%c0_6, %c0_7] : memref<8x8xf32, #tpu.memory_space<vmem>>, vector<8x8xf32>
    %c0_8 = arith.constant 0 : index
    %c0_9 = arith.constant 0 : index
    %54 = vector.load %arg6[%c0_8, %c0_9] : memref<8x1xf32, #tpu.memory_space<vmem>>, vector<8x1xf32>
    %55 = vector.extract_strided_slice %53 {offsets = [0, 0], sizes = [8, 1], strides = [1, 1]} : vector<8x8xf32> to vector<8x1xf32>
    %56 = vector.extract_strided_slice %52 {offsets = [0, 0], sizes = [1, 256], strides = [1, 1]} : vector<8x256xf32> to vector<1x256xf32>
    %57 = vector.broadcast %55 : vector<8x1xf32> to vector<8x256xf32>
    %58 = vector.broadcast %56 : vector<1x256xf32> to vector<8x256xf32>
    %59 = arith.mulf %57, %58 : vector<8x256xf32>
    %60 = vector.extract_strided_slice %53 {offsets = [0, 1], sizes = [8, 1], strides = [1, 1]} : vector<8x8xf32> to vector<8x1xf32>
    %61 = vector.extract_strided_slice %52 {offsets = [1, 0], sizes = [1, 256], strides = [1, 1]} : vector<8x256xf32> to vector<1x256xf32>
    %62 = vector.broadcast %60 : vector<8x1xf32> to vector<8x256xf32>
    %63 = vector.broadcast %61 : vector<1x256xf32> to vector<8x256xf32>
    %64 = arith.mulf %62, %63 : vector<8x256xf32>
    %65 = arith.addf %59, %64 : vector<8x256xf32>
    %66 = vector.extract_strided_slice %53 {offsets = [0, 2], sizes = [8, 1], strides = [1, 1]} : vector<8x8xf32> to vector<8x1xf32>
    %67 = vector.extract_strided_slice %52 {offsets = [2, 0], sizes = [1, 256], strides = [1, 1]} : vector<8x256xf32> to vector<1x256xf32>
    %68 = vector.broadcast %66 : vector<8x1xf32> to vector<8x256xf32>
    %69 = vector.broadcast %67 : vector<1x256xf32> to vector<8x256xf32>
    %70 = arith.mulf %68, %69 : vector<8x256xf32>
    %71 = arith.addf %65, %70 : vector<8x256xf32>
    %72 = vector.extract_strided_slice %53 {offsets = [0, 3], sizes = [8, 1], strides = [1, 1]} : vector<8x8xf32> to vector<8x1xf32>
    %73 = vector.extract_strided_slice %52 {offsets = [3, 0], sizes = [1, 256], strides = [1, 1]} : vector<8x256xf32> to vector<1x256xf32>
    %74 = vector.broadcast %72 : vector<8x1xf32> to vector<8x256xf32>
    %75 = vector.broadcast %73 : vector<1x256xf32> to vector<8x256xf32>
    %76 = arith.mulf %74, %75 : vector<8x256xf32>
    %77 = arith.addf %71, %76 : vector<8x256xf32>
    %78 = vector.extract_strided_slice %53 {offsets = [0, 4], sizes = [8, 1], strides = [1, 1]} : vector<8x8xf32> to vector<8x1xf32>
    %79 = vector.extract_strided_slice %52 {offsets = [4, 0], sizes = [1, 256], strides = [1, 1]} : vector<8x256xf32> to vector<1x256xf32>
    %80 = vector.broadcast %78 : vector<8x1xf32> to vector<8x256xf32>
    %81 = vector.broadcast %79 : vector<1x256xf32> to vector<8x256xf32>
    %82 = arith.mulf %80, %81 : vector<8x256xf32>
    %83 = arith.addf %77, %82 : vector<8x256xf32>
    %84 = vector.extract_strided_slice %53 {offsets = [0, 5], sizes = [8, 1], strides = [1, 1]} : vector<8x8xf32> to vector<8x1xf32>
    %85 = vector.extract_strided_slice %52 {offsets = [5, 0], sizes = [1, 256], strides = [1, 1]} : vector<8x256xf32> to vector<1x256xf32>
    %86 = vector.broadcast %84 : vector<8x1xf32> to vector<8x256xf32>
    %87 = vector.broadcast %85 : vector<1x256xf32> to vector<8x256xf32>
    %88 = arith.mulf %86, %87 : vector<8x256xf32>
    %89 = arith.addf %83, %88 : vector<8x256xf32>
    %90 = vector.extract_strided_slice %53 {offsets = [0, 6], sizes = [8, 1], strides = [1, 1]} : vector<8x8xf32> to vector<8x1xf32>
    %91 = vector.extract_strided_slice %52 {offsets = [6, 0], sizes = [1, 256], strides = [1, 1]} : vector<8x256xf32> to vector<1x256xf32>
    %92 = vector.broadcast %90 : vector<8x1xf32> to vector<8x256xf32>
    %93 = vector.broadcast %91 : vector<1x256xf32> to vector<8x256xf32>
    %94 = arith.mulf %92, %93 : vector<8x256xf32>
    %95 = arith.addf %89, %94 : vector<8x256xf32>
    %96 = vector.extract_strided_slice %53 {offsets = [0, 7], sizes = [8, 1], strides = [1, 1]} : vector<8x8xf32> to vector<8x1xf32>
    %97 = vector.extract_strided_slice %52 {offsets = [7, 0], sizes = [1, 256], strides = [1, 1]} : vector<8x256xf32> to vector<1x256xf32>
    %98 = vector.broadcast %96 : vector<8x1xf32> to vector<8x256xf32>
    %99 = vector.broadcast %97 : vector<1x256xf32> to vector<8x256xf32>
    %100 = arith.mulf %98, %99 : vector<8x256xf32>
    %101 = arith.addf %95, %100 : vector<8x256xf32>
    %102 = vector.broadcast %54 : vector<8x1xf32> to vector<8x256xf32>
    %103 = arith.addf %101, %102 : vector<8x256xf32>
    %104 = arith.negf %103 : vector<8x256xf32>
    %105 = math.exp %104 : vector<8x256xf32>
    %cst = arith.constant 1.000000e+00 : f32
    %106 = vector.broadcast %cst : f32 to vector<8x256xf32>
    %107 = arith.addf %106, %105 : vector<8x256xf32>
    %108 = arith.divf %106, %107 : vector<8x256xf32>
    %c0_10 = arith.constant 0 : index
    %c0_11 = arith.constant 0 : index
    %109 = vector.load %arg7[%c0_10, %c0_11] : memref<8x8xf32, #tpu.memory_space<vmem>>, vector<8x8xf32>
    %c0_12 = arith.constant 0 : index
    %c0_13 = arith.constant 0 : index
    %110 = vector.load %arg8[%c0_12, %c0_13] : memref<8x1xf32, #tpu.memory_space<vmem>>, vector<8x1xf32>
    %111 = vector.extract_strided_slice %109 {offsets = [0, 0], sizes = [8, 1], strides = [1, 1]} : vector<8x8xf32> to vector<8x1xf32>
    %112 = vector.extract_strided_slice %1 {offsets = [0, 0], sizes = [1, 256], strides = [1, 1]} : vector<8x256xf32> to vector<1x256xf32>
    %113 = vector.broadcast %111 : vector<8x1xf32> to vector<8x256xf32>
    %114 = vector.broadcast %112 : vector<1x256xf32> to vector<8x256xf32>
    %115 = arith.mulf %113, %114 : vector<8x256xf32>
    %116 = vector.extract_strided_slice %109 {offsets = [0, 1], sizes = [8, 1], strides = [1, 1]} : vector<8x8xf32> to vector<8x1xf32>
    %117 = vector.extract_strided_slice %1 {offsets = [1, 0], sizes = [1, 256], strides = [1, 1]} : vector<8x256xf32> to vector<1x256xf32>
    %118 = vector.broadcast %116 : vector<8x1xf32> to vector<8x256xf32>
    %119 = vector.broadcast %117 : vector<1x256xf32> to vector<8x256xf32>
    %120 = arith.mulf %118, %119 : vector<8x256xf32>
    %121 = arith.addf %115, %120 : vector<8x256xf32>
    %122 = vector.extract_strided_slice %109 {offsets = [0, 2], sizes = [8, 1], strides = [1, 1]} : vector<8x8xf32> to vector<8x1xf32>
    %123 = vector.extract_strided_slice %1 {offsets = [2, 0], sizes = [1, 256], strides = [1, 1]} : vector<8x256xf32> to vector<1x256xf32>
    %124 = vector.broadcast %122 : vector<8x1xf32> to vector<8x256xf32>
    %125 = vector.broadcast %123 : vector<1x256xf32> to vector<8x256xf32>
    %126 = arith.mulf %124, %125 : vector<8x256xf32>
    %127 = arith.addf %121, %126 : vector<8x256xf32>
    %128 = vector.extract_strided_slice %109 {offsets = [0, 3], sizes = [8, 1], strides = [1, 1]} : vector<8x8xf32> to vector<8x1xf32>
    %129 = vector.extract_strided_slice %1 {offsets = [3, 0], sizes = [1, 256], strides = [1, 1]} : vector<8x256xf32> to vector<1x256xf32>
    %130 = vector.broadcast %128 : vector<8x1xf32> to vector<8x256xf32>
    %131 = vector.broadcast %129 : vector<1x256xf32> to vector<8x256xf32>
    %132 = arith.mulf %130, %131 : vector<8x256xf32>
    %133 = arith.addf %127, %132 : vector<8x256xf32>
    %134 = vector.extract_strided_slice %109 {offsets = [0, 4], sizes = [8, 1], strides = [1, 1]} : vector<8x8xf32> to vector<8x1xf32>
    %135 = vector.extract_strided_slice %1 {offsets = [4, 0], sizes = [1, 256], strides = [1, 1]} : vector<8x256xf32> to vector<1x256xf32>
    %136 = vector.broadcast %134 : vector<8x1xf32> to vector<8x256xf32>
    %137 = vector.broadcast %135 : vector<1x256xf32> to vector<8x256xf32>
    %138 = arith.mulf %136, %137 : vector<8x256xf32>
    %139 = arith.addf %133, %138 : vector<8x256xf32>
    %140 = vector.extract_strided_slice %109 {offsets = [0, 5], sizes = [8, 1], strides = [1, 1]} : vector<8x8xf32> to vector<8x1xf32>
    %141 = vector.extract_strided_slice %1 {offsets = [5, 0], sizes = [1, 256], strides = [1, 1]} : vector<8x256xf32> to vector<1x256xf32>
    %142 = vector.broadcast %140 : vector<8x1xf32> to vector<8x256xf32>
    %143 = vector.broadcast %141 : vector<1x256xf32> to vector<8x256xf32>
    %144 = arith.mulf %142, %143 : vector<8x256xf32>
    %145 = arith.addf %139, %144 : vector<8x256xf32>
    %146 = vector.extract_strided_slice %109 {offsets = [0, 6], sizes = [8, 1], strides = [1, 1]} : vector<8x8xf32> to vector<8x1xf32>
    %147 = vector.extract_strided_slice %1 {offsets = [6, 0], sizes = [1, 256], strides = [1, 1]} : vector<8x256xf32> to vector<1x256xf32>
    %148 = vector.broadcast %146 : vector<8x1xf32> to vector<8x256xf32>
    %149 = vector.broadcast %147 : vector<1x256xf32> to vector<8x256xf32>
    %150 = arith.mulf %148, %149 : vector<8x256xf32>
    %151 = arith.addf %145, %150 : vector<8x256xf32>
    %152 = vector.extract_strided_slice %109 {offsets = [0, 7], sizes = [8, 1], strides = [1, 1]} : vector<8x8xf32> to vector<8x1xf32>
    %153 = vector.extract_strided_slice %1 {offsets = [7, 0], sizes = [1, 256], strides = [1, 1]} : vector<8x256xf32> to vector<1x256xf32>
    %154 = vector.broadcast %152 : vector<8x1xf32> to vector<8x256xf32>
    %155 = vector.broadcast %153 : vector<1x256xf32> to vector<8x256xf32>
    %156 = arith.mulf %154, %155 : vector<8x256xf32>
    %157 = arith.addf %151, %156 : vector<8x256xf32>
    %158 = vector.broadcast %110 : vector<8x1xf32> to vector<8x256xf32>
    %159 = arith.addf %157, %158 : vector<8x256xf32>
    %cst_14 = arith.constant 1.000000e+00 : f32
    %160 = vector.broadcast %cst_14 : f32 to vector<8x256xf32>
    %161 = arith.addf %108, %160 : vector<8x256xf32>
    %162 = arith.mulf %1, %161 : vector<8x256xf32>
    %163 = arith.addf %162, %159 : vector<8x256xf32>
    %c0_15 = arith.constant 0 : index
    %c0_16 = arith.constant 0 : index
    %c0_17 = arith.constant 0 : index
    %164 = vector.load %arg9[%c0_15, %c0_16, %c0_17] : memref<1x8x256xf32, #tpu.memory_space<vmem>>, vector<1x8x256xf32>
    %165 = vector.shape_cast %164 : vector<1x8x256xf32> to vector<8x256xf32>
    %166 = vector.shape_cast %163 : vector<8x256xf32> to vector<1x8x256xf32>
    tpu.vector_store %arg9[%c0_15, %c0_16, %c0_17], %166 {strides = array<i32>} : memref<1x8x256xf32, #tpu.memory_space<vmem>>, vector<1x8x256xf32>,
    return
  }
  func.func @transform_0(%arg0: i32, %arg1: i32) -> (i32, i32, i32) {
    %c0_i32 = arith.constant 0 : i32
    %c0_i32_0 = arith.constant 0 : i32
    return %arg0, %c0_i32, %arg1 : i32, i32, i32
  }
  func.func @transform_1(%arg0: i32, %arg1: i32) -> (i32, i32) {
    %c0_i32 = arith.constant 0 : i32
    %c0_i32_0 = arith.constant 0 : i32
    %c0_i32_1 = arith.constant 0 : i32
    return %c0_i32, %c0_i32_0 : i32, i32
  }
  func.func @transform_2(%arg0: i32, %arg1: i32) -> (i32, i32) {
    %c0_i32 = arith.constant 0 : i32
    %c0_i32_0 = arith.constant 0 : i32
    %c0_i32_1 = arith.constant 0 : i32
    return %c0_i32, %c0_i32_0 : i32, i32
  }
  func.func @transform_3(%arg0: i32, %arg1: i32) -> (i32, i32) {
    %c0_i32 = arith.constant 0 : i32
    %c0_i32_0 = arith.constant 0 : i32
    %c0_i32_1 = arith.constant 0 : i32
    return %c0_i32, %c0_i32_0 : i32, i32
  }
  func.func @transform_4(%arg0: i32, %arg1: i32) -> (i32, i32) {
    %c0_i32 = arith.constant 0 : i32
    %c0_i32_0 = arith.constant 0 : i32
    %c0_i32_1 = arith.constant 0 : i32
    return %c0_i32, %c0_i32_0 : i32, i32
  }
  func.func @transform_5(%arg0: i32, %arg1: i32) -> (i32, i32) {
    %c0_i32 = arith.constant 0 : i32
    %c0_i32_0 = arith.constant 0 : i32
    %c0_i32_1 = arith.constant 0 : i32
    return %c0_i32, %c0_i32_0 : i32, i32
  }
  func.func @transform_6(%arg0: i32, %arg1: i32) -> (i32, i32) {
    %c0_i32 = arith.constant 0 : i32
    %c0_i32_0 = arith.constant 0 : i32
    %c0_i32_1 = arith.constant 0 : i32
    return %c0_i32, %c0_i32_0 : i32, i32
  }
  func.func @transform_7(%arg0: i32, %arg1: i32) -> (i32, i32, i32) {
    %c0_i32 = arith.constant 0 : i32
    %c0_i32_0 = arith.constant 0 : i32
    return %arg0, %c0_i32, %arg1 : i32, i32, i32
  }
}

</mosaic_0001>

<llo_original>
// kernel: tpu_custom_call.1
$region0: #{tpu_custom_call.1}
  #allocation0 [shape = 'u32[]', space=smem, size = 0x4, offset = 0x4, fixed_abs, tag = 'smem constant byte address 0x4 - core index']
  #allocation1 [shape = 'u32[72,128]{1,0:T(1,128)}', space=vmem, size = 0x9000, scoped, tag = 'internal scratch']
  %s0 = inlined_call_operand.hbm [shape: f32[2,8,256], index: 0, kind: input, shape index: {}]
  %s1 = inlined_call_operand.vmem [shape: f32[8,8], index: 1, kind: input, shape index: {}]
  %s2 = inlined_call_operand.vmem [shape: f32[8,1], index: 2, kind: input, shape index: {}]
  %s3 = inlined_call_operand.vmem [shape: f32[8,8], index: 3, kind: input, shape index: {}]
  %s4 = inlined_call_operand.vmem [shape: f32[8,1], index: 4, kind: input, shape index: {}]
  %s5 = inlined_call_operand.vmem [shape: f32[8,8], index: 5, kind: input, shape index: {}]
  %s6 = inlined_call_operand.vmem [shape: f32[8,1], index: 6, kind: input, shape index: {}]
  %s7 = inlined_call_operand.hbm [shape: f32[2,8,256], index: 7, kind: output, shape index: {}]
  %s8 = sld [smem:[#allocation0]]
  $region65: #{tpu_custom_call.1} parent=0
    _
  %s10 = ssub.s32 1, %s8
  %s11 = scalar_select 0, %s10, %s8
  $region1: #{tpu_custom_call.1} parent=0
    #allocation2 [shape = 'u8[16384]{0}', space=vmem, size = 0x4000, scoped, tag = 'input window, operand 0']
    #allocation3 [shape = 's32[2]{0}', space=sflag, size = 0x8, scoped, tag = 'scoped memory for tpu_custom_call.1']
    #allocation4 [shape = 's32[2]{0}', space=sflag, size = 0x8, scoped, tag = 'scoped memory for tpu_custom_call.1']
    #allocation5 [shape = 'u8[16384]{0}', space=vmem, size = 0x4000, scoped, tag = 'output window, operand 0']
    %12 = vsyncpa [#allocation3], 0
    %s13 = scalar_lea.sflag [#allocation3], 1
    %14 = vsyncpa %s13, 0
    %15 = vsyncpa [#allocation4], 0
    %s16 = scalar_lea.sflag [#allocation4], 1
    %17 = vsyncpa %s16, 0
    loop: start=0, step=1, limit=4
    $region2: #{tpu_custom_call.1} parent=1 // loop_pre_header
      _
    $region3: #{tpu_custom_call.1} parent=1 // loop_header
      %s19 = sphi 0, %s23
      %p20 = scmp.ge.s32.totalorder %s19, 4
      %s26 = sphi 0, %s38
      %s27 = sphi 0, %s34
      %s28 = sphi 0, %s26
      %s29 = sphi 0, %s27
      %s30 = sphi 0, %s28
      %s31 = sphi 0, %s29
      %s43 = sphi 0, %s45
      %s46 = sphi 0, %s43
      %s47 = sphi 0, %s46
      %s63 = sphi 0, %s47
      %s67 = sphi 0, %s67
      %s69 = sphi 0, %s67
      %s70 = sphi 0, %s69
      %s84 = sphi 0, %s70
      %s88 = sphi 0, %s88
      %s90 = sphi 0, %s88
      %s91 = sphi 0, %s90
      %s105 = sphi 0, %s91
      %s109 = sphi 0, %s109
      %s111 = sphi 0, %s109
      %s112 = sphi 0, %s111
      %s126 = sphi 0, %s112
      %s130 = sphi 0, %s130
      %s132 = sphi 0, %s130
      %s133 = sphi 0, %s132
      %s147 = sphi 0, %s133
      %s151 = sphi 0, %s151
      %s153 = sphi 0, %s151
      %s154 = sphi 0, %s153
      %s168 = sphi 0, %s154
      %s172 = sphi 0, %s172
      %s174 = sphi 0, %s172
      %s175 = sphi 0, %s174
      %s189 = sphi 0, %s175
      %s197 = sphi 0, %s199
      %s200 = sphi 0, %s197
      %s201 = sphi 0, %s200
      %s217 = sphi 0, %s201
    $region4: #{tpu_custom_call.1} parent=1 // loop_header_branch
      %22 = sbr.rel (%p20) target = $region8
    $region5: #{tpu_custom_call.1} parent=1 // loop_body
      %s24 = ssub.s32 %s19, 1
      %s25 = ssub.s32 %s19, 2
      %s32 = sadd.s32 1, %s27
      %p33 = scmp.ge.s32.totalorder %s32, 1
      %s34 = scalar_select %p33, 0, %s32
      %s35 = sadd.s32 1, %s26
      %s36 = scalar_select %p33, %s35, %s26
      %p37 = scmp.ge.s32.totalorder %s36, 2
      %s38 = scalar_select %p37, 0, %s36
      %s39 = ssub.s32 %s26, %s38
      %s40 = ssub.s32 %s27, %s34
      %s41 = sor.u32 %s39, %s40
      %p42 = scmp.eq.s32.totalorder %s41, 0
      %s44 = sadd.s32 %s43, 1
      %s45 = scalar_select %p42, %s43, %s44
      %p48 = pneg %p42
      %p49 = scmp.eq.s32.totalorder %s19, 1
      %p50 = por %p48, %p49
      %p51 = scmp.ne.s32.totalorder %s43, %s46
      %p52 = scmp.eq.s32.totalorder %s19, 0
      %p53 = por %p51, %p52
      %p54 = scmp.ne.s32.totalorder %s43, %s46
      %p55 = scmp.eq.s32.totalorder %s24, 1
      %p56 = por %p54, %p55
      %p57 = scmp.ne.s32.totalorder %s46, %s47
      %p58 = scmp.eq.s32.totalorder %s24, 0
      %p59 = por %p57, %p58
      %p60 = scmp.ne.s32.totalorder %s46, %s47
      %p61 = scmp.eq.s32.totalorder %s25, 1
      %p62 = por %p60, %p61
      %p64 = scmp.ne.s32.totalorder %s47, %s63
      %p65 = scmp.eq.s32.totalorder %s25, 0
      %p66 = por %p64, %p65
      %s68 = sadd.s32 %s67, 1
      %p71 = scmp.eq.s32.totalorder %s19, 1
      %p72 = scmp.ne.s32.totalorder %s67, %s69
      %p73 = scmp.eq.s32.totalorder %s19, 0
      %p74 = por %p72, %p73
      %p75 = scmp.ne.s32.totalorder %s67, %s69
      %p76 = scmp.eq.s32.totalorder %s24, 1
      %p77 = por %p75, %p76
      %p78 = scmp.ne.s32.totalorder %s69, %s70
      %p79 = scmp.eq.s32.totalorder %s24, 0
      %p80 = por %p78, %p79
      %p81 = scmp.ne.s32.totalorder %s69, %s70
      %p82 = scmp.eq.s32.totalorder %s25, 1
      %p83 = por %p81, %p82
      %p85 = scmp.ne.s32.totalorder %s70, %s84
      %p86 = scmp.eq.s32.totalorder %s25, 0
      %p87 = por %p85, %p86
      %s89 = sadd.s32 %s88, 1
      %p92 = scmp.eq.s32.totalorder %s19, 1
      %p93 = scmp.ne.s32.totalorder %s88, %s90
      %p94 = scmp.eq.s32.totalorder %s19, 0
      %p95 = por %p93, %p94
      %p96 = scmp.ne.s32.totalorder %s88, %s90
      %p97 = scmp.eq.s32.totalorder %s24, 1
      %p98 = por %p96, %p97
      %p99 = scmp.ne.s32.totalorder %s90, %s91
      %p100 = scmp.eq.s32.totalorder %s24, 0
      %p101 = por %p99, %p100
      %p102 = scmp.ne.s32.totalorder %s90, %s91
      %p103 = scmp.eq.s32.totalorder %s25, 1
      %p104 = por %p102, %p103
      %p106 = scmp.ne.s32.totalorder %s91, %s105
      %p107 = scmp.eq.s32.totalorder %s25, 0
      %p108 = por %p106, %p107
      %s110 = sadd.s32 %s109, 1
      %p113 = scmp.eq.s32.totalorder %s19, 1
      %p114 = scmp.ne.s32.totalorder %s109, %s111
      %p115 = scmp.eq.s32.totalorder %s19, 0
      %p116 = por %p114, %p115
      %p117 = scmp.ne.s32.totalorder %s109, %s111
      %p118 = scmp.eq.s32.totalorder %s24, 1
      %p119 = por %p117, %p118
      %p120 = scmp.ne.s32.totalorder %s111, %s112
      %p121 = scmp.eq.s32.totalorder %s24, 0
      %p122 = por %p120, %p121
      %p123 = scmp.ne.s32.totalorder %s111, %s112
      %p124 = scmp.eq.s32.totalorder %s25, 1
      %p125 = por %p123, %p124
      %p127 = scmp.ne.s32.totalorder %s112, %s126
      %p128 = scmp.eq.s32.totalorder %s25, 0
      %p129 = por %p127, %p128
      %s131 = sadd.s32 %s130, 1
      %p134 = scmp.eq.s32.totalorder %s19, 1
      %p135 = scmp.ne.s32.totalorder %s130, %s132
      %p136 = scmp.eq.s32.totalorder %s19, 0
      %p137 = por %p135, %p136
      %p138 = scmp.ne.s32.totalorder %s130, %s132
      %p139 = scmp.eq.s32.totalorder %s24, 1
      %p140 = por %p138, %p139
      %p141 = scmp.ne.s32.totalorder %s132, %s133
      %p142 = scmp.eq.s32.totalorder %s24, 0
      %p143 = por %p141, %p142
      %p144 = scmp.ne.s32.totalorder %s132, %s133
      %p145 = scmp.eq.s32.totalorder %s25, 1
      %p146 = por %p144, %p145
      %p148 = scmp.ne.s32.totalorder %s133, %s147
      %p149 = scmp.eq.s32.totalorder %s25, 0
      %p150 = por %p148, %p149
      %s152 = sadd.s32 %s151, 1
      %p155 = scmp.eq.s32.totalorder %s19, 1
      %p156 = scmp.ne.s32.totalorder %s151, %s153
      %p157 = scmp.eq.s32.totalorder %s19, 0
      %p158 = por %p156, %p157
      %p159 = scmp.ne.s32.totalorder %s151, %s153
      %p160 = scmp.eq.s32.totalorder %s24, 1
      %p161 = por %p159, %p160
      %p162 = scmp.ne.s32.totalorder %s153, %s154
      %p163 = scmp.eq.s32.totalorder %s24, 0
      %p164 = por %p162, %p163
      %p165 = scmp.ne.s32.totalorder %s153, %s154
      %p166 = scmp.eq.s32.totalorder %s25, 1
      %p167 = por %p165, %p166
      %p169 = scmp.ne.s32.totalorder %s154, %s168
      %p170 = scmp.eq.s32.totalorder %s25, 0
      %p171 = por %p169, %p170
      %s173 = sadd.s32 %s172, 1
      %p176 = scmp.eq.s32.totalorder %s19, 1
      %p177 = scmp.ne.s32.totalorder %s172, %s174
      %p178 = scmp.eq.s32.totalorder %s19, 0
      %p179 = por %p177, %p178
      %p180 = scmp.ne.s32.totalorder %s172, %s174
      %p181 = scmp.eq.s32.totalorder %s24, 1
      %p182 = por %p180, %p181
      %p183 = scmp.ne.s32.totalorder %s174, %s175
      %p184 = scmp.eq.s32.totalorder %s24, 0
      %p185 = por %p183, %p184
      %p186 = scmp.ne.s32.totalorder %s174, %s175
      %p187 = scmp.eq.s32.totalorder %s25, 1
      %p188 = por %p186, %p187
      %p190 = scmp.ne.s32.totalorder %s175, %s189
      %p191 = scmp.eq.s32.totalorder %s25, 0
      %p192 = por %p190, %p191
      %s193 = ssub.s32 %s26, %s38
      %s194 = ssub.s32 %s27, %s34
      %s195 = sor.u32 %s193, %s194
      %p196 = scmp.eq.s32.totalorder %s195, 0
      %s198 = sadd.s32 %s197, 1
      %s199 = scalar_select %p196, %s197, %s198
      %p202 = pneg %p196
      %p203 = scmp.eq.s32.totalorder %s19, 1
      %p204 = por %p202, %p203
      %p205 = scmp.ne.s32.totalorder %s197, %s200
      %p206 = scmp.eq.s32.totalorder %s19, 0
      %p207 = por %p205, %p206
      %p208 = scmp.ne.s32.totalorder %s197, %s200
      %p209 = scmp.eq.s32.totalorder %s24, 1
      %p210 = por %p208, %p209
      %p211 = scmp.ne.s32.totalorder %s200, %s201
      %p212 = scmp.eq.s32.totalorder %s24, 0
      %p213 = por %p211, %p212
      %p214 = scmp.ne.s32.totalorder %s200, %s201
      %p215 = scmp.eq.s32.totalorder %s25, 1
      %p216 = por %p214, %p215
      %p218 = scmp.ne.s32.totalorder %s201, %s217
      %p219 = scmp.eq.s32.totalorder %s25, 0
      %p220 = por %p218, %p219
      %p221 = scmp.le.s32.totalorder 1, %s19
      %p222 = scmp.lt.s32.totalorder %s19, 3
      %p223 = pnand %p221, %p222
      %p224 = pneg %p223
      // Predicated region
      $region9: #{tpu_custom_call.1} parent=5 // pred_check
        _
      $region10: #{tpu_custom_call.1} parent=5 // pred_check_branch
        %226 = sbr.rel (%p223) target = $region12
      $region11: #{tpu_custom_call.1} parent=5 // pred_region
        %s227 = ssub.s32 %s19, 1
        // Predicated region
        $region13: #{tpu_custom_call.1} parent=11 // pred_check
          %p228 = pneg %p80
        $region14: #{tpu_custom_call.1} parent=11 // pred_check_branch
          %230 = sbr.rel (%p228) target = $region16
        $region15: #{tpu_custom_call.1} parent=11 // pred_region
          _
        $region16: #{tpu_custom_call.1} parent=11 // pred_fallthru
          _
        // Predicated region
        $region17: #{tpu_custom_call.1} parent=11 // pred_check
          %p231 = pneg %p101
        $region18: #{tpu_custom_call.1} parent=11 // pred_check_branch
          %233 = sbr.rel (%p231) target = $region20
        $region19: #{tpu_custom_call.1} parent=11 // pred_region
          _
        $region20: #{tpu_custom_call.1} parent=11 // pred_fallthru
          _
        // Predicated region
        $region21: #{tpu_custom_call.1} parent=11 // pred_check
          %p234 = pneg %p122
        $region22: #{tpu_custom_call.1} parent=11 // pred_check_branch
          %236 = sbr.rel (%p234) target = $region24
        $region23: #{tpu_custom_call.1} parent=11 // pred_region
          _
        $region24: #{tpu_custom_call.1} parent=11 // pred_fallthru
          _
        // Predicated region
        $region25: #{tpu_custom_call.1} parent=11 // pred_check
          %p237 = pneg %p143
        $region26: #{tpu_custom_call.1} parent=11 // pred_check_branch
          %239 = sbr.rel (%p237) target = $region28
        $region27: #{tpu_custom_call.1} parent=11 // pred_region
          _
        $region28: #{tpu_custom_call.1} parent=11 // pred_fallthru
          _
        // Predicated region
        $region29: #{tpu_custom_call.1} parent=11 // pred_check
          %p240 = pneg %p164
        $region30: #{tpu_custom_call.1} parent=11 // pred_check_branch
          %242 = sbr.rel (%p240) target = $region32
        $region31: #{tpu_custom_call.1} parent=11 // pred_region
          _
        $region32: #{tpu_custom_call.1} parent=11 // pred_fallthru
          _
        // Predicated region
        $region33: #{tpu_custom_call.1} parent=11 // pred_check
          %p243 = pneg %p185
        $region34: #{tpu_custom_call.1} parent=11 // pred_check_branch
          %245 = sbr.rel (%p243) target = $region36
        $region35: #{tpu_custom_call.1} parent=11 // pred_region
          _
        $region36: #{tpu_custom_call.1} parent=11 // pred_fallthru
          _
      $region12: #{tpu_custom_call.1} parent=5 // pred_fallthru
        _
      %p246 = scmp.lt.s32.totalorder %s19, 2
      // Predicated region
      $region37: #{tpu_custom_call.1} parent=5 // pred_check
        %p247 = pneg %p246
      $region38: #{tpu_custom_call.1} parent=5 // pred_check_branch
        %249 = sbr.rel (%p247) target = $region40
      $region39: #{tpu_custom_call.1} parent=5 // pred_region
        // Predicated region
        $region41: #{tpu_custom_call.1} parent=39 // pred_check
          %p250 = pneg %p53
        $region42: #{tpu_custom_call.1} parent=39 // pred_check_branch
          %252 = sbr.rel (%p250) target = $region44
        $region43: #{tpu_custom_call.1} parent=39 // pred_region
          %s253 = sand.u32 %s43, 1
          %s254 = scalar_lea.sflag [#allocation3], %s253
          %s255 = sand.u32 %s43, 1
          %s256 = smul.addr %s255, 16
          %s257 = scalar_lea.vmem [#allocation2], %s256
          %s258 = smul.u32 2, %s27
          %260 = vsyncadd %s254, 0
          %s261 = smul.addr %s26, 2
          %s262 = sadd.s32 %s258, %s261
          %s263 = smul.addr %s262, 8
          %s264 = scalar_lea.hbm %s0, %s263
          %s266 = sshll.u32 %s264, 4
          %s267 = int_to_ptr.hbm [resolvable:$true] %s266
          %s268 = sshll.u32 %s257, 4
          %s269 = int_to_ptr.vmem [resolvable:$true] %s268
          %271 = dma.hbm_to_vmem [thread:$0]  %s267, 256, %s269, %s254
        $region44: #{tpu_custom_call.1} parent=39 // pred_fallthru
          _
      $region40: #{tpu_custom_call.1} parent=5 // pred_fallthru
        _
      %p272 = scmp.le.s32.totalorder 1, %s19
      %p273 = scmp.lt.s32.totalorder %s19, 3
      %p274 = pnand %p272, %p273
      %p275 = pneg %p274
      // Predicated region
      $region45: #{tpu_custom_call.1} parent=5 // pred_check
        _
      $region46: #{tpu_custom_call.1} parent=5 // pred_check_branch
        %277 = sbr.rel (%p274) target = $region48
      $region47: #{tpu_custom_call.1} parent=5 // pred_region
        %s278 = ssub.s32 %s19, 1
        %s279 = sand.u32 %s46, 1
        %s280 = scalar_lea.sflag [#allocation3], %s279
        %s281 = sand.u32 %s46, 1
        %s282 = smul.addr %s281, 16
        %s283 = scalar_lea.vmem [#allocation2], %s282
        // Predicated region
        $region49: #{tpu_custom_call.1} parent=47 // pred_check
          %p284 = pneg %p59
        $region50: #{tpu_custom_call.1} parent=47 // pred_check_branch
          %286 = sbr.rel (%p284) target = $region52
        $region51: #{tpu_custom_call.1} parent=47 // pred_region
          %288 = dma.done %s280, 256
        $region52: #{tpu_custom_call.1} parent=47 // pred_fallthru
          _
        %s289 = sand.u32 %s46, 1
        %s290 = scalar_lea.sflag [#allocation3], %s289
        %s291 = sand.u32 %s46, 1
        %s292 = smul.addr %s291, 16
        %s293 = scalar_lea.vmem [#allocation2], %s292
        %p294 = pneg %p59
        %p295 = pneg %p56
        %p296 = pneg %p80
        %p297 = pneg %p77
        %p298 = pneg %p101
        %p299 = pneg %p98
        %p300 = pneg %p122
        %p301 = pneg %p119
        %p302 = pneg %p143
        %p303 = pneg %p140
        %p304 = pneg %p164
        %p305 = pneg %p161
        %p306 = pneg %p185
        %p307 = pneg %p182
        %p308 = pneg %p213
        %p309 = pneg %p210
        %s310 = sand.u32 %s200, 1
        %s311 = scalar_lea.sflag [#allocation4], %s310
        %s312 = sand.u32 %s200, 1
        %s313 = smul.addr %s312, 16
        %s314 = scalar_lea.vmem [#allocation5], %s313
        %s315 = smul.u32 2, %s29
        %s316 = smul.u32 2, %s29
        %v317 = vld [vmem:[%s283] sm:$0xff]
        %v318 = vld [vmem:[%s283 + $0x8] sm:$0xff]
        %v319 = vld [vmem:[%s1] sm:$0xff]
        %v320 = vld [vmem:[%s2] sm:$0xff]
        %322 = vset.pattern.permute.xlu0 0
        %323 = vperm.xlu0 %322, %v319
        %v324 = vpop.permute.xlu0 %323
        %v326 = vperm.slane %v317, 0
        %v327 = vperm.slane %v318, 0
        %v328 = vmul.f32 %v324, %v326
        %v329 = vmul.f32 %v324, %v327
        %330 = vset.pattern.permute.xlu0 1
        %331 = vperm.xlu0 %330, %v319
        %v332 = vpop.permute.xlu0 %331
        %v334 = vperm.slane %v317, 1
        %v335 = vperm.slane %v318, 1
        %v336 = vmul.f32 %v332, %v334
        %v337 = vmul.f32 %v332, %v335
        %v338 = vadd.f32 %v328, %v336
        %v339 = vadd.f32 %v329, %v337
        %340 = vset.pattern.permute.xlu0 2
        %341 = vperm.xlu0 %340, %v319
        %v342 = vpop.permute.xlu0 %341
        %v344 = vperm.slane %v317, 2
        %v345 = vperm.slane %v318, 2
        %v346 = vmul.f32 %v342, %v344
        %v347 = vmul.f32 %v342, %v345
        %v348 = vadd.f32 %v338, %v346
        %v349 = vadd.f32 %v339, %v347
        %350 = vset.pattern.permute.xlu0 3
        %351 = vperm.xlu0 %350, %v319
        %v352 = vpop.permute.xlu0 %351
        %v354 = vperm.slane %v317, 3
        %v355 = vperm.slane %v318, 3
        %v356 = vmul.f32 %v352, %v354
        %v357 = vmul.f32 %v352, %v355
        %v358 = vadd.f32 %v348, %v356
        %v359 = vadd.f32 %v349, %v357
        %360 = vset.pattern.permute.xlu0 4
        %361 = vperm.xlu0 %360, %v319
        %v362 = vpop.permute.xlu0 %361
        %v364 = vperm.slane %v317, 4
        %v365 = vperm.slane %v318, 4
        %v366 = vmul.f32 %v362, %v364
        %v367 = vmul.f32 %v362, %v365
        %v368 = vadd.f32 %v358, %v366
        %v369 = vadd.f32 %v359, %v367
        %370 = vset.pattern.permute.xlu0 5
        %371 = vperm.xlu0 %370, %v319
        %v372 = vpop.permute.xlu0 %371
        %v374 = vperm.slane %v317, 5
        %v375 = vperm.slane %v318, 5
        %v376 = vmul.f32 %v372, %v374
        %v377 = vmul.f32 %v372, %v375
        %v378 = vadd.f32 %v368, %v376
        %v379 = vadd.f32 %v369, %v377
        %380 = vset.pattern.permute.xlu0 6
        %381 = vperm.xlu0 %380, %v319
        %v382 = vpop.permute.xlu0 %381
        %v384 = vperm.slane %v317, 6
        %v385 = vperm.slane %v318, 6
        %v386 = vmul.f32 %v382, %v384
        %v387 = vmul.f32 %v382, %v385
        %v388 = vadd.f32 %v378, %v386
        %v389 = vadd.f32 %v379, %v387
        %390 = vset.pattern.permute.xlu0 7
        %391 = vperm.xlu0 %390, %v319
        %v392 = vpop.permute.xlu0 %391
        %v394 = vperm.slane %v317, 7
        %v395 = vperm.slane %v318, 7
        %v396 = vmul.f32 %v392, %v394
        %v397 = vmul.f32 %v392, %v395
        %v398 = vadd.f32 %v388, %v396
        %v399 = vadd.f32 %v389, %v397
        %401 = vset.pattern.permute.xlu0 0
        %402 = vperm.xlu0 %401, %v320
        %v403 = vpop.permute.xlu0 %402
        %v405 = vadd.f32 %v398, %v403
        %v406 = vadd.f32 %v399, %v403
        %v407 = vld [vmem:[%s3] sm:$0xff]
        %v408 = vld [vmem:[%s4] sm:$0xff]
        %410 = vset.pattern.permute.xlu0 0
        %411 = vperm.xlu0 %410, %v407
        %v412 = vpop.permute.xlu0 %411
        %v414 = vperm.slane %v405, 0
        %v415 = vperm.slane %v406, 0
        %v416 = vmul.f32 %v412, %v414
        %v417 = vmul.f32 %v412, %v415
        %418 = vset.pattern.permute.xlu0 1
        %419 = vperm.xlu0 %418, %v407
        %v420 = vpop.permute.xlu0 %419
        %v422 = vperm.slane %v405, 1
        %v423 = vperm.slane %v406, 1
        %v424 = vmul.f32 %v420, %v422
        %v425 = vmul.f32 %v420, %v423
        %v426 = vadd.f32 %v416, %v424
        %v427 = vadd.f32 %v417, %v425
        %428 = vset.pattern.permute.xlu0 2
        %429 = vperm.xlu0 %428, %v407
        %v430 = vpop.permute.xlu0 %429
        %v432 = vperm.slane %v405, 2
        %v433 = vperm.slane %v406, 2
        %v434 = vmul.f32 %v430, %v432
        %v435 = vmul.f32 %v430, %v433
        %v436 = vadd.f32 %v426, %v434
        %v437 = vadd.f32 %v427, %v435
        %438 = vset.pattern.permute.xlu0 3
        %439 = vperm.xlu0 %438, %v407
        %v440 = vpop.permute.xlu0 %439
        %v442 = vperm.slane %v405, 3
        %v443 = vperm.slane %v406, 3
        %v444 = vmul.f32 %v440, %v442
        %v445 = vmul.f32 %v440, %v443
        %v446 = vadd.f32 %v436, %v444
        %v447 = vadd.f32 %v437, %v445
        %448 = vset.pattern.permute.xlu0 4
        %449 = vperm.xlu0 %448, %v407
        %v450 = vpop.permute.xlu0 %449
        %v452 = vperm.slane %v405, 4
        %v453 = vperm.slane %v406, 4
        %v454 = vmul.f32 %v450, %v452
        %v455 = vmul.f32 %v450, %v453
        %v456 = vadd.f32 %v446, %v454
        %v457 = vadd.f32 %v447, %v455
        %458 = vset.pattern.permute.xlu0 5
        %459 = vperm.xlu0 %458, %v407
        %v460 = vpop.permute.xlu0 %459
        %v462 = vperm.slane %v405, 5
        %v463 = vperm.slane %v406, 5
        %v464 = vmul.f32 %v460, %v462
        %v465 = vmul.f32 %v460, %v463
        %v466 = vadd.f32 %v456, %v464
        %v467 = vadd.f32 %v457, %v465
        %468 = vset.pattern.permute.xlu0 6
        %469 = vperm.xlu0 %468, %v407
        %v470 = vpop.permute.xlu0 %469
        %v472 = vperm.slane %v405, 6
        %v473 = vperm.slane %v406, 6
        %v474 = vmul.f32 %v470, %v472
        %v475 = vmul.f32 %v470, %v473
        %v476 = vadd.f32 %v466, %v474
        %v477 = vadd.f32 %v467, %v475
        %478 = vset.pattern.permute.xlu0 7
        %479 = vperm.xlu0 %478, %v407
        %v480 = vpop.permute.xlu0 %479
        %v482 = vperm.slane %v405, 7
        %v483 = vperm.slane %v406, 7
        %v484 = vmul.f32 %v480, %v482
        %v485 = vmul.f32 %v480, %v483
        %v486 = vadd.f32 %v476, %v484
        %v487 = vadd.f32 %v477, %v485
        %489 = vset.pattern.permute.xlu0 0
        %490 = vperm.xlu0 %489, %v408
        %v491 = vpop.permute.xlu0 %490
        %v493 = vadd.f32 %v486, %v491
        %v494 = vadd.f32 %v487, %v491
        %v495 = vxor.u32 %v493, 2147483648
        %v496 = vxor.u32 %v494, 2147483648
        %v497 = vmul.f32 %v495, 1.442695
        %v498 = vpow.pop %v497
        %v499 = vmul.f32 %v496, 1.442695
        %v500 = vpow.pop %v499
        %v501 = vadd.f32 %v498, 1.0
        %v502 = vadd.f32 %v500, 1.0
        %v503 = vrcp.pop %v501
        %v504 = vmul.f32 %v501, %v503
        %v505 = vsub.f32 1.0, %v504
        %v506 = vmul.f32 %v503, %v505
        %v507 = vadd.f32 %v503, %v506
        %vm508 = vweird.f32 %v501
        %vm509 = vweird.f32 %v503
        %vm510 = vmor %vm508, %vm509
        %v511 = vsel %vm510, %v503, %v507
        %v512 = vand.u32 2147483647, %v501
        %vm513 = vcmp.eq.f32.partialorder %v512, 8.507059e+37
        %v514 = vand.u32 %v501, 2147483648
        %v515 = vor.u32 1.1754944e-38, %v514
        %v516 = vsel %vm513, %v515, %v511
        %v517 = vmul.f32 1.0, %v516
        %v518 = vrcp.pop %v502
        %v519 = vmul.f32 %v502, %v518
        %v520 = vsub.f32 1.0, %v519
        %v521 = vmul.f32 %v518, %v520
        %v522 = vadd.f32 %v518, %v521
        %vm523 = vweird.f32 %v502
        %vm524 = vweird.f32 %v518
        %vm525 = vmor %vm523, %vm524
        %v526 = vsel %vm525, %v518, %v522
        %v527 = vand.u32 2147483647, %v502
        %vm528 = vcmp.eq.f32.partialorder %v527, 8.507059e+37
        %v529 = vand.u32 %v502, 2147483648
        %v530 = vor.u32 1.1754944e-38, %v529
        %v531 = vsel %vm528, %v530, %v526
        %v532 = vmul.f32 1.0, %v531
        %v533 = vld [vmem:[%s5] sm:$0xff]
        %v534 = vld [vmem:[%s6] sm:$0xff]
        %536 = vset.pattern.permute.xlu0 0
        %537 = vperm.xlu0 %536, %v533
        %v538 = vpop.permute.xlu0 %537
        %v540 = vmul.f32 %v538, %v326
        %v541 = vmul.f32 %v538, %v327
        %542 = vset.pattern.permute.xlu0 1
        %543 = vperm.xlu0 %542, %v533
        %v544 = vpop.permute.xlu0 %543
        %v546 = vmul.f32 %v544, %v334
        %v547 = vmul.f32 %v544, %v335
        %v548 = vadd.f32 %v540, %v546
        %v549 = vadd.f32 %v541, %v547
        %550 = vset.pattern.permute.xlu0 2
        %551 = vperm.xlu0 %550, %v533
        %v552 = vpop.permute.xlu0 %551
        %v554 = vmul.f32 %v552, %v344
        %v555 = vmul.f32 %v552, %v345
        %v556 = vadd.f32 %v548, %v554
        %v557 = vadd.f32 %v549, %v555
        %558 = vset.pattern.permute.xlu0 3
        %559 = vperm.xlu0 %558, %v533
        %v560 = vpop.permute.xlu0 %559
        %v562 = vmul.f32 %v560, %v354
        %v563 = vmul.f32 %v560, %v355
        %v564 = vadd.f32 %v556, %v562
        %v565 = vadd.f32 %v557, %v563
        %566 = vset.pattern.permute.xlu0 4
        %567 = vperm.xlu0 %566, %v533
        %v568 = vpop.permute.xlu0 %567
        %v570 = vmul.f32 %v568, %v364
        %v571 = vmul.f32 %v568, %v365
        %v572 = vadd.f32 %v564, %v570
        %v573 = vadd.f32 %v565, %v571
        %574 = vset.pattern.permute.xlu0 5
        %575 = vperm.xlu0 %574, %v533
        %v576 = vpop.permute.xlu0 %575
        %v578 = vmul.f32 %v576, %v374
        %v579 = vmul.f32 %v576, %v375
        %v580 = vadd.f32 %v572, %v578
        %v581 = vadd.f32 %v573, %v579
        %582 = vset.pattern.permute.xlu0 6
        %583 = vperm.xlu0 %582, %v533
        %v584 = vpop.permute.xlu0 %583
        %v586 = vmul.f32 %v584, %v384
        %v587 = vmul.f32 %v584, %v385
        %v588 = vadd.f32 %v580, %v586
        %v589 = vadd.f32 %v581, %v587
        %590 = vset.pattern.permute.xlu0 7
        %591 = vperm.xlu0 %590, %v533
        %v592 = vpop.permute.xlu0 %591
        %v594 = vmul.f32 %v592, %v394
        %v595 = vmul.f32 %v592, %v395
        %v596 = vadd.f32 %v588, %v594
        %v597 = vadd.f32 %v589, %v595
        %599 = vset.pattern.permute.xlu0 0
        %600 = vperm.xlu0 %599, %v534
        %v601 = vpop.permute.xlu0 %600
        %v603 = vadd.f32 %v596, %v601
        %v604 = vadd.f32 %v597, %v601
        %v605 = vadd.f32 %v517, 1.0
        %v606 = vadd.f32 %v532, 1.0
        %v607 = vmul.f32 %v317, %v605
        %v608 = vmul.f32 %v318, %v606
        %v609 = vadd.f32 %v607, %v603
        %v610 = vadd.f32 %v608, %v604
        %611 = vst [vmem:[%s314] sm:$0xff] %v609
        %612 = vst [vmem:[%s314 + $0x8] sm:$0xff] %v610
        %s613 = sand.u32 %s200, 1
        %s614 = scalar_lea.sflag [#allocation4], %s613
        %s615 = sand.u32 %s200, 1
        %s616 = smul.addr %s615, 16
        %s617 = scalar_lea.vmem [#allocation5], %s616
        // Predicated region
        $region53: #{tpu_custom_call.1} parent=47 // pred_check
          %p618 = pneg %p210
        $region54: #{tpu_custom_call.1} parent=47 // pred_check_branch
          %620 = sbr.rel (%p618) target = $region56
        $region55: #{tpu_custom_call.1} parent=47 // pred_region
          %s621 = smul.u32 2, %s29
          %623 = vsyncadd %s614, 0
          %s624 = smul.addr %s28, 2
          %s625 = sadd.s32 %s621, %s624
          %s626 = smul.addr %s625, 8
          %s627 = scalar_lea.hbm %s7, %s626
          %s629 = sshll.u32 %s617, 4
          %s630 = int_to_ptr.vmem [resolvable:$true] %s629
          %s631 = sshll.u32 %s627, 4
          %s632 = int_to_ptr.hbm [resolvable:$true] %s631
          %634 = dma.vmem_to_hbm [thread:$0]  %s630, 256, %s632, %s614
        $region56: #{tpu_custom_call.1} parent=47 // pred_fallthru
          _
      $region48: #{tpu_custom_call.1} parent=5 // pred_fallthru
        _
      %p635 = scmp.le.s32.totalorder 2, %s19
      // Predicated region
      $region57: #{tpu_custom_call.1} parent=5 // pred_check
        %p636 = pneg %p635
      $region58: #{tpu_custom_call.1} parent=5 // pred_check_branch
        %638 = sbr.rel (%p636) target = $region60
      $region59: #{tpu_custom_call.1} parent=5 // pred_region
        %s639 = ssub.s32 %s19, 2
        // Predicated region
        $region61: #{tpu_custom_call.1} parent=59 // pred_check
          %p640 = pneg %p216
        $region62: #{tpu_custom_call.1} parent=59 // pred_check_branch
          %642 = sbr.rel (%p640) target = $region64
        $region63: #{tpu_custom_call.1} parent=59 // pred_region
          %s643 = sand.u32 %s201, 1
          %s644 = scalar_lea.sflag [#allocation4], %s643
          %s645 = sand.u32 %s201, 1
          %s646 = smul.addr %s645, 16
          %s647 = scalar_lea.vmem [#allocation5], %s646
          %649 = dma.done %s644, 256
        $region64: #{tpu_custom_call.1} parent=59 // pred_fallthru
          _
      $region60: #{tpu_custom_call.1} parent=5 // pred_fallthru
        _
    $region6: #{tpu_custom_call.1} parent=1 // loop_footer
      %s23 = sadd.s32 1, %s19
    $region7: #{tpu_custom_call.1} parent=1 // loop_footer_branch
      %18 = sbr.rel target = $region3
    $region8: #{tpu_custom_call.1} parent=1 // loop_exit
      _
    %650 = vsyncpa [#allocation3], 1
    %s651 = scalar_lea.sflag [#allocation3], 1
    %652 = vsyncpa %s651, 1
    %653 = vsyncpa [#allocation4], 1
    %s654 = scalar_lea.sflag [#allocation4], 1
    %655 = vsyncpa %s654, 1

</llo_original>
